<compile_context>
chip_gen: v6e
topology: v6e:2x2x1
jax: 0.10.0
libtpu: 0.0.40
codegen_flags: <defaults>
</compile_context>

<pallas_src>
import jax
import jax.numpy as jnp
import numpy as np
from jax import lax
from jax.experimental import pallas as pl
from jax.experimental.pallas import tpu as pltpu

ALPHA = 0.2            # LeakyReLU negative slope (constructor arg `alpha`)
NEG_BIG = -9e15        # zero_vec value from the reference module
LANE = 128


def _round_up(x, m):
    return (x + m - 1) // m * m


def _maybe_buffered(block_shape, index_map, nbuf):
    """BlockSpec with an explicit buffer count; falls back if unsupported."""
    try:
        return pl.BlockSpec(block_shape, index_map, pipeline_mode=pl.Buffered(nbuf))
    except Exception:
        return pl.BlockSpec(block_shape, index_map)


def _vmem_capacity_bytes():
    try:
        return int(pltpu.get_tpu_info().vmem_capacity_bytes)
    except Exception:
        return 64 << 20            # conservative (v7x per-TensorCore)


def _pick_row_tile(n, n_cols_p, fout_p, vmem_cap):
    """Largest 32-multiple row tile whose kernel-2 working set fits ~75% VMEM."""
    resident = n_cols_p * fout_p * 2 + n_cols_p * 4        # Wh + wh2 (1-buffered)
    budget = int(0.75 * vmem_cap) - resident - (4 << 20)   # headroom
    # per-row bytes: adj int8 x2buf + attn bf16 out x2buf + ~3 f32 body temps
    #                + h_prime f32 out x2buf + wh1 f32 x2buf
    per_row = n_cols_p * (1 * 2 + 2 * 2 + 4 * 3) + fout_p * 4 * 2 + 4 * 2
    tm = max(32, min(512, budget // per_row, _round_up(n, 32)))
    return (tm // 32) * 32


# ---------------------------------------------------------------------------
# Kernel 1: feature projection (row-tiled, hoisted out of the attention loop).
# ---------------------------------------------------------------------------
def _proj_kernel(h_ref, w_ref, a1_ref, a2_ref, wh_ref, wh1_ref, wh2_ref):
    # Wh tile = h_tile @ W   (bf16 MXU feed, f32 accumulation)
    wh = jnp.dot(h_ref[...], w_ref[...], preferred_element_type=jnp.float32)
    wh_ref[...] = wh.astype(wh_ref.dtype)                  # bf16 for 2nd matmul

    # wh1 = Wh @ a[:F]  -> (tk, 1)
    wh1_ref[...] = lax.dot_general(
        wh, a1_ref[...], (((1,), (1,)), ((), ())),
        preferred_element_type=jnp.float32)

    # wh2_row = (Wh @ a[F:]).T -> (1, tk), produced directly (no XLU transpose)
    wh2_ref[...] = lax.dot_general(
        a2_ref[...], wh, (((1,), (1,)), ((), ())),
        preferred_element_type=jnp.float32)


# ---------------------------------------------------------------------------
# Kernel 2: row-tiled masked softmax + neighbourhood aggregation.
# One grid step handles TM query rows against all padded-N neighbour columns.
# ---------------------------------------------------------------------------
def _attn_kernel(wh1_ref, wh2_ref, adj_ref, wh_ref, hprime_ref, attn_ref):
    # e = leakyrelu(wh1 + wh2_row), then mask:  where(adj > 0, e, -9e15)
    s = wh1_ref[...] + wh2_ref[...]                         # (TM, NC) f32
    e = jnp.where(s > 0, s, ALPHA * s)
    masked = jnp.where(adj_ref[...] > 0, e, NEG_BIG)        # int8 0/1 mask

    # row softmax (padded / all-masked rows stay finite: exp(0) everywhere)
    m = jnp.max(masked, axis=1, keepdims=True)
    p = jnp.exp(masked - m)
    denom = jnp.sum(p, axis=1, keepdims=True)

    # single bf16 cast, reused for the attention store AND the MXU feed
    attn_bf = (p * pl.reciprocal(denom, approx=True)).astype(attn_ref.dtype)
    attn_ref[...] = attn_bf

    # h_prime = attention @ Wh  (bf16 MXU feed, f32 accumulation), then ELU
    hp = jnp.dot(attn_bf, wh_ref[...], preferred_element_type=jnp.float32)
    hprime_ref[...] = jnp.where(
        hp > 0, hp, jnp.exp(jnp.minimum(hp, 0.0)) - 1.0
    ).astype(hprime_ref.dtype)


# ---------------------------------------------------------------------------
# Wrapper
# ---------------------------------------------------------------------------
def gat_forward(h, adj, W, a, *, row_tile=None):
    """GAT layer forward (concat=True): returns (elu(h_prime), attention).

    h: (N, F_in), adj: (N, N), W: (F_in, F_out), a: (2*F_out, 1).
    attention is returned in bf16 (stored in bf16 to halve the N^2 HBM write).
    """
    N, f_in = h.shape
    f_out = W.shape[1]

    # --- TPU-friendly padding / tiling -----------------------------------
    fin_p = _round_up(f_in, LANE)
    fout_p = _round_up(f_out, LANE)              # lane-dense h_prime stores
    n_cols_p = _round_up(N, LANE)                # column padding (decoupled)

    vmem_cap = _vmem_capacity_bytes()
    tm = row_tile if row_tile is not None else _pick_row_tile(
        N, n_cols_p, fout_p, vmem_cap)
    tm = max(32, (tm // 32) * 32)                # int8 adj sublane packing
    n_rows_p = _round_up(N, tm)                  # row padding

    # kernel-1 row tile: multiple of 128 so the (1, tk1) wh2 blocks are
    # lane-aligned; n_big covers both the row- and column-padded extents.
    n_big0 = max(n_rows_p, n_cols_p)
    tk1 = 128 if n_big0 <= 512 else 512
    n_big = _round_up(n_big0, tk1)

    f32, bf16, i8 = jnp.float32, jnp.bfloat16, jnp.int8
    h_p = jnp.zeros((n_big, fin_p), bf16).at[:N, :f_in].set(h.astype(bf16))
    w_p = jnp.zeros((fin_p, fout_p), bf16).at[:f_in, :f_out].set(W.astype(bf16))
    a1 = jnp.zeros((1, fout_p), f32).at[0, :f_out].set(a[:f_out, 0].astype(f32))
    a2 = jnp.zeros((1, fout_p), f32).at[0, :f_out].set(a[f_out:, 0].astype(f32))
    # adj is only ever tested for positivity -> exact 0/1 int8 mask
    adj_mask = jnp.zeros((n_rows_p, n_cols_p), i8).at[:N, :N].set(
        (adj > 0).astype(i8))

    # --- kernel 1: projection (row-tiled, pipelined h DMA) ----------------
    k1_need = (2 * fin_p * fout_p * 2            # W (worst-case double-buffered)
               + 2 * tk1 * fin_p * 2             # h tiles
               + 2 * tk1 * fout_p * 2            # Wh out tiles
               + 4 * tk1 * 4                     # wh1 / wh2 out tiles
               + tk1 * fout_p * 4                # f32 accumulator temp
               + 4 * fout_p * 4                  # a1 / a2
               + (2 << 20))
    k1_vmem = int(min(0.85 * vmem_cap, max(k1_need, 16 << 20)))

    wh, wh1, wh2 = pl.pallas_call(
        _proj_kernel,
        out_shape=(
            jax.ShapeDtypeStruct((n_big, fout_p), bf16),    # Wh (bf16)
            jax.ShapeDtypeStruct((n_big, 1), f32),          # Wh @ a[:F]
            jax.ShapeDtypeStruct((1, n_big), f32),          # (Wh @ a[F:]).T
        ),
        grid=(n_big // tk1,),
        in_specs=[
            pl.BlockSpec((tk1, fin_p), lambda i: (i, 0)),           # h tile
            _maybe_buffered((fin_p, fout_p), lambda i: (0, 0), 1),  # W resident
            _maybe_buffered((1, fout_p), lambda i: (0, 0), 1),      # a1 resident
            _maybe_buffered((1, fout_p), lambda i: (0, 0), 1),      # a2 resident
        ],
        out_specs=(
            pl.BlockSpec((tk1, fout_p), lambda i: (i, 0)),
            pl.BlockSpec((tk1, 1), lambda i: (i, 0)),
            pl.BlockSpec((1, tk1), lambda i: (0, i)),
        ),
        compiler_params=pltpu.CompilerParams(
            dimension_semantics=("parallel",),
            vmem_limit_bytes=k1_vmem),
        cost_estimate=pl.CostEstimate(
            flops=2 * n_big * fin_p * fout_p + 4 * n_big * fout_p,
            transcendentals=0,
            bytes_accessed=(n_big * fin_p * 2 + fin_p * fout_p * 2
                            + n_big * fout_p * 2 + n_big * 8 + fout_p * 8)),
    )(h_p, w_p, a1, a2)

    # --- kernel 2: row-tiled attention ------------------------------------
    resident = n_cols_p * fout_p * 2 + n_cols_p * 4
    k2_need = (resident
               + 2 * tm * n_cols_p * 1           # adj tiles (int8)
               + 2 * tm * n_cols_p * 2           # attention out tiles (bf16)
               + 2 * tm * fout_p * 4             # h_prime out tiles
               + 2 * tm * 4                      # wh1 tiles
               + 3 * tm * n_cols_p * 4           # in-body f32 temporaries
               + (4 << 20))
    k2_vmem = int(min(0.85 * vmem_cap, max(k2_need, 32 << 20)))
    k2_flops = 2 * n_rows_p * n_cols_p * fout_p + 8 * n_rows_p * n_cols_p
    k2_bytes = (n_rows_p * n_cols_p * (1 + 2)    # adj read + bf16 attn write
                + n_cols_p * fout_p * 2 + n_rows_p * fout_p * 4
                + n_rows_p * 4 + n_cols_p * 4)

    hprime_p, attn_p = pl.pallas_call(
        _attn_kernel,
        out_shape=(
            jax.ShapeDtypeStruct((n_rows_p, fout_p), f32),
            jax.ShapeDtypeStruct((n_rows_p, n_cols_p), bf16),   # bf16 attention
        ),
        grid=(n_rows_p // tm,),
        in_specs=[
            pl.BlockSpec((tm, 1), lambda i: (i, 0)),                   # wh1 tile
            _maybe_buffered((1, n_cols_p), lambda i: (0, 0), 1),       # wh2 row
            pl.BlockSpec((tm, n_cols_p), lambda i: (i, 0)),            # adj tile
            _maybe_buffered((n_cols_p, fout_p), lambda i: (0, 0), 1),  # Wh resident
        ],
        out_specs=(
            pl.BlockSpec((tm, fout_p), lambda i: (i, 0)),              # h_prime
            pl.BlockSpec((tm, n_cols_p), lambda i: (i, 0)),            # attention
        ),
        compiler_params=pltpu.CompilerParams(
            dimension_semantics=("parallel",),
            vmem_limit_bytes=k2_vmem),
        cost_estimate=pl.CostEstimate(
            flops=k2_flops,
            transcendentals=n_rows_p * n_cols_p + n_rows_p,
            bytes_accessed=k2_bytes),
    )(wh1, wh2, adj_mask, wh)

    return hprime_p[:N, :f_out], attn_p[:N, :N]


def xavier_uniform(key, shape, gain):
    fan_in, fan_out = shape[0], shape[1]
    bound = gain * np.sqrt(6.0 / (fan_in + fan_out))
    return jax.random.uniform(key, shape, jnp.float32, -bound, bound)


if __name__ == "__main__":
    # small shapes consistent with the module: N nodes, F_in -> F_out
    N, F_IN, F_OUT = 8, 16, 32
    key = jax.random.PRNGKey(0)
    k_h, k_adj, k_w, k_a = jax.random.split(key, 4)

    h = jax.random.normal(k_h, (N, F_IN), jnp.float32)
    adj = (jax.random.uniform(k_adj, (N, N)) > 0.5).astype(jnp.float32)
    adj = jnp.maximum(adj, jnp.eye(N, dtype=jnp.float32))   # self-loops

    W = xavier_uniform(k_w, (F_IN, F_OUT), gain=1.414)
    a = xavier_uniform(k_a, (2 * F_OUT, 1), gain=1.414)

    h_prime, attention = gat_forward(h, adj, W, a)
    jax.block_until_ready((h_prime, attention))
    attention_f32 = attention.astype(jnp.float32)

    # (a) precision-matched reference (bf16 MXU feed / f32 accumulation)
    Wh_bf = jnp.dot(h.astype(jnp.bfloat16), W.astype(jnp.bfloat16),
                    preferred_element_type=jnp.float32)
    e = Wh_bf @ a[:F_OUT] + (Wh_bf @ a[F_OUT:]).T
    e = jnp.where(e > 0, e, ALPHA * e)
    attn_ref = jax.nn.softmax(jnp.where(adj > 0, e, NEG_BIG), axis=1)
    hp_ref = jax.nn.elu(jnp.dot(attn_ref.astype(jnp.bfloat16),
                                Wh_bf.astype(jnp.bfloat16),
                                preferred_element_type=jnp.float32))
    assert jnp.allclose(attention_f32, attn_ref, atol=2e-2, rtol=2e-2), "attention mismatch"
    assert jnp.allclose(h_prime, hp_ref, atol=2e-2, rtol=2e-2), "h_prime mismatch"

    # (b) loose sanity check vs full-f32 torch-equivalent math
    Wh = h @ W
    e32 = Wh @ a[:F_OUT] + (Wh @ a[F_OUT:]).T
    e32 = jnp.where(e32 > 0, e32, ALPHA * e32)
    attn32 = jax.nn.softmax(jnp.where(adj > 0, e32, NEG_BIG), axis=1)
    hp32 = jax.nn.elu(attn32 @ Wh)
    assert jnp.allclose(attention_f32, attn32, atol=1e-1), "attention far from f32 ref"
    assert jnp.allclose(h_prime, hp32, atol=1e-1), "h_prime far from f32 ref"

    print("KERNEL_OK")
</pallas_src>

<mosaic_0001>
module attributes {stable_mosaic.version = 11 : i64} {
  func.func @_proj_kernel(%arg0: i32, %arg1: memref<128x128xbf16, #tpu.memory_space<vmem>>, %arg2: memref<128x128xbf16, #tpu.memory_space<vmem>>, %arg3: memref<1x128xf32, #tpu.memory_space<vmem>>, %arg4: memref<1x128xf32, #tpu.memory_space<vmem>>, %arg5: memref<128x128xbf16, #tpu.memory_space<vmem>>, %arg6: memref<128x1xf32, #tpu.memory_space<vmem>>, %arg7: memref<1x128xf32, #tpu.memory_space<vmem>>) attributes {dimension_semantics = [#tpu.dimension_semantics<parallel>], iteration_bounds = array<i64: 1>, scalar_prefetch = 0 : i64, scratch_operands = 0 : i64, tpu.core_type = #tpu.core_type<tc>, window_params = [{transform_indices = @transform_0, window_bounds = array<i64: 128, 128>}, {pipeline_mode = #tpu.pipeline_mode<synchronous>, transform_indices = @transform_1, window_bounds = array<i64: 128, 128>}, {pipeline_mode = #tpu.pipeline_mode<synchronous>, transform_indices = @transform_2, window_bounds = array<i64: 1, 128>}, {pipeline_mode = #tpu.pipeline_mode<synchronous>, transform_indices = @transform_3, window_bounds = array<i64: 1, 128>}, {transform_indices = @transform_4, window_bounds = array<i64: 128, 128>}, {transform_indices = @transform_5, window_bounds = array<i64: 128, 1>}, {transform_indices = @transform_6, window_bounds = array<i64: 1, 128>}]} {
    %c0 = arith.constant 0 : index
    %c0_0 = arith.constant 0 : index
    %0 = vector.load %arg1[%c0, %c0_0] : memref<128x128xbf16, #tpu.memory_space<vmem>>, vector<128x128xbf16>
    %c0_1 = arith.constant 0 : index
    %c0_2 = arith.constant 0 : index
    %1 = vector.load %arg2[%c0_1, %c0_2] : memref<128x128xbf16, #tpu.memory_space<vmem>>, vector<128x128xbf16>
    %cst = arith.constant dense<0.000000e+00> : vector<128x128xf32>
    %2 = tpu.matmul %0, %1, %cst {dimension_numbers = #tpu.dot_dimension_numbers<[1], [0], [0], [1], [0, 0, 1, 1], [], []>} : vector<128x128xbf16>, vector<128x128xbf16>, vector<128x128xf32> -> vector<128x128xf32>
    %3 = arith.truncf %2 : vector<128x128xf32> to vector<128x128xbf16>
    %c0_3 = arith.constant 0 : index
    %c0_4 = arith.constant 0 : index
    %4 = vector.load %arg5[%c0_3, %c0_4] : memref<128x128xbf16, #tpu.memory_space<vmem>>, vector<128x128xbf16>
    tpu.vector_store %arg5[%c0_3, %c0_4], %3 {strides = array<i32>} : memref<128x128xbf16, #tpu.memory_space<vmem>>, vector<128x128xbf16>,
    %c0_5 = arith.constant 0 : index
    %c0_6 = arith.constant 0 : index
    %5 = vector.load %arg3[%c0_5, %c0_6] : memref<1x128xf32, #tpu.memory_space<vmem>>, vector<1x128xf32>
    %cst_7 = arith.constant dense<0.000000e+00> : vector<128x1xf32>
    %6 = tpu.matmul %2, %5, %cst_7 {dimension_numbers = #tpu.dot_dimension_numbers<[1], [1], [0], [0], [0, 0, 1, 0], [], []>} : vector<128x128xf32>, vector<1x128xf32>, vector<128x1xf32> -> vector<128x1xf32>
    %c0_8 = arith.constant 0 : index
    %c0_9 = arith.constant 0 : index
    %7 = vector.load %arg6[%c0_8, %c0_9] : memref<128x1xf32, #tpu.memory_space<vmem>>, vector<128x1xf32>
    tpu.vector_store %arg6[%c0_8, %c0_9], %6 {strides = array<i32>} : memref<128x1xf32, #tpu.memory_space<vmem>>, vector<128x1xf32>,
    %c0_10 = arith.constant 0 : index
    %c0_11 = arith.constant 0 : index
    %8 = vector.load %arg4[%c0_10, %c0_11] : memref<1x128xf32, #tpu.memory_space<vmem>>, vector<1x128xf32>
    %cst_12 = arith.constant dense<0.000000e+00> : vector<1x128xf32>
    %9 = tpu.matmul %8, %2, %cst_12 {dimension_numbers = #tpu.dot_dimension_numbers<[1], [1], [0], [0], [0, 0, 1, 0], [], []>} : vector<1x128xf32>, vector<128x128xf32>, vector<1x128xf32> -> vector<1x128xf32>
    %c0_13 = arith.constant 0 : index
    %c0_14 = arith.constant 0 : index
    %10 = vector.load %arg7[%c0_13, %c0_14] : memref<1x128xf32, #tpu.memory_space<vmem>>, vector<1x128xf32>
    tpu.vector_store %arg7[%c0_13, %c0_14], %9 {strides = array<i32>} : memref<1x128xf32, #tpu.memory_space<vmem>>, vector<1x128xf32>,
    return
  }
  func.func @transform_0(%arg0: i32) -> (i32, i32) {
    %c0_i32 = arith.constant 0 : i32
    %c0_i32_0 = arith.constant 0 : i32
    return %arg0, %c0_i32 : i32, i32
  }
  func.func @transform_1(%arg0: i32) -> (i32, i32) {
    %c0_i32 = arith.constant 0 : i32
    %c0_i32_0 = arith.constant 0 : i32
    %c0_i32_1 = arith.constant 0 : i32
    return %c0_i32, %c0_i32_0 : i32, i32
  }
  func.func @transform_2(%arg0: i32) -> (i32, i32) {
    %c0_i32 = arith.constant 0 : i32
    %c0_i32_0 = arith.constant 0 : i32
    %c0_i32_1 = arith.constant 0 : i32
    return %c0_i32, %c0_i32_0 : i32, i32
  }
  func.func @transform_3(%arg0: i32) -> (i32, i32) {
    %c0_i32 = arith.constant 0 : i32
    %c0_i32_0 = arith.constant 0 : i32
    %c0_i32_1 = arith.constant 0 : i32
    return %c0_i32, %c0_i32_0 : i32, i32
  }
  func.func @transform_4(%arg0: i32) -> (i32, i32) {
    %c0_i32 = arith.constant 0 : i32
    %c0_i32_0 = arith.constant 0 : i32
    return %arg0, %c0_i32 : i32, i32
  }
  func.func @transform_5(%arg0: i32) -> (i32, i32) {
    %c0_i32 = arith.constant 0 : i32
    %c0_i32_0 = arith.constant 0 : i32
    return %arg0, %c0_i32 : i32, i32
  }
  func.func @transform_6(%arg0: i32) -> (i32, i32) {
    %c0_i32 = arith.constant 0 : i32
    %c0_i32_0 = arith.constant 0 : i32
    return %c0_i32, %arg0 : i32, i32
  }
}

</mosaic_0001>

<llo_original>
// kernel: tpu_custom_call.1
$region0: #{tpu_custom_call.1}
  #allocation0 [shape = 'u32[]', space=smem, size = 0x4, offset = 0x4, fixed_abs, tag = 'smem constant byte address 0x4 - core index']
  #allocation1 [shape = 'u32[144,128]{1,0:T(1,128)}', space=vmem, size = 0x12000, scoped, tag = 'internal scratch']
  %s0 = inlined_call_operand.hbm [shape: bf16[128,128], index: 0, kind: input, shape index: {}]
  %s1 = inlined_call_operand.hbm [shape: bf16[128,128], index: 1, kind: input, shape index: {}]
  %s2 = inlined_call_operand.vmem [shape: f32[1,128], index: 2, kind: input, shape index: {}]
  %s3 = inlined_call_operand.vmem [shape: f32[1,128], index: 3, kind: input, shape index: {}]
  %s4 = inlined_call_operand.hbm [shape: bf16[128,128], index: 4, kind: output, shape index: {0}]
  %s5 = inlined_call_operand.vmem [shape: f32[128,1], index: 5, kind: output, shape index: {1}]
  %s6 = inlined_call_operand.hbm [shape: f32[1,128], index: 6, kind: output, shape index: {2}]
  %7 = xla_tuple %s4, %s5, %s6
  %s8 = sld [smem:[#allocation0]]
  $region50: #{tpu_custom_call.1} parent=0
    _
  %s10 = ssub.s32 1, %s8
  %s11 = scalar_select 0, %s10, %s8
  $region1: #{tpu_custom_call.1} parent=0
    #allocation2 [shape = 'u8[32768]{0}', space=vmem, size = 0x8000, scoped, tag = 'input window, operand 0, single buffered']
    #allocation3 [shape = 's32[1]{0}', space=sflag, size = 0x4, scoped, tag = 'scoped memory for tpu_custom_call.1']
    #allocation4 [shape = 's32[1]{0}', space=sflag, size = 0x4, scoped, tag = 'scoped memory for tpu_custom_call.1']
    #allocation5 [shape = 'u8[32768]{0}', space=vmem, size = 0x8000, scoped, tag = 'input window, operand 1, single buffered']
    #allocation6 [shape = 's32[1]{0}', space=sflag, size = 0x4, scoped, tag = 'scoped memory for tpu_custom_call.1']
    #allocation7 [shape = 'u8[32768]{0}', space=vmem, size = 0x8000, scoped, tag = 'output window, operand 0, single buffered']
    #allocation8 [shape = 'u8[512]{0}', space=vmem, size = 0x400, scoped, tag = 'output window, operand 2, single buffered']
    #allocation9 [shape = 's32[1]{0}', space=sflag, size = 0x4, scoped, tag = 'scoped memory for tpu_custom_call.1']
    %12 = vsyncpa [#allocation3], 0
    %13 = vsyncpa [#allocation6], 0
    %14 = vsyncpa [#allocation4], 0
    %15 = vsyncpa [#allocation9], 0
    // Predicated region
    $region2: #{tpu_custom_call.1} parent=1 // pred_check
      _
    $region3: #{tpu_custom_call.1} parent=1 // pred_check_branch
      %17 = sbr.rel (0) target = $region5
    $region4: #{tpu_custom_call.1} parent=1 // pred_region
      %s19 = ssub.s32 1024, 1024
      %20 = vsyncadd [#allocation3], %s19
      %s21 = sshll.u32 [#allocation2], 4
      %s22 = int_to_ptr.vmem [resolvable:$true] %s21
      %27 = dma.hbm_to_vmem [thread:$0]  %s0, 1024, %s22, [#allocation3], 64, 64, 4
    $region5: #{tpu_custom_call.1} parent=1 // pred_fallthru
      _
    // Predicated region
    $region6: #{tpu_custom_call.1} parent=1 // pred_check
      _
    $region7: #{tpu_custom_call.1} parent=1 // pred_check_branch
      %29 = sbr.rel (0) target = $region9
    $region8: #{tpu_custom_call.1} parent=1 // pred_region
      %s31 = ssub.s32 1024, 1024
      %32 = vsyncadd [#allocation6], %s31
      %s33 = sshll.u32 [#allocation5], 4
      %s34 = int_to_ptr.vmem [resolvable:$true] %s33
      %39 = dma.hbm_to_vmem [thread:$0]  %s1, 1024, %s34, [#allocation6], 64, 64, 4
    $region9: #{tpu_custom_call.1} parent=1 // pred_fallthru
      _
    // Predicated region
    $region10: #{tpu_custom_call.1} parent=1 // pred_check
      _
    $region11: #{tpu_custom_call.1} parent=1 // pred_check_branch
      %41 = sbr.rel (0) target = $region13
    $region12: #{tpu_custom_call.1} parent=1 // pred_region
      _
    $region13: #{tpu_custom_call.1} parent=1 // pred_fallthru
      _
    // Predicated region
    $region14: #{tpu_custom_call.1} parent=1 // pred_check
      _
    $region15: #{tpu_custom_call.1} parent=1 // pred_check_branch
      %43 = sbr.rel (0) target = $region17
    $region16: #{tpu_custom_call.1} parent=1 // pred_region
      _
    $region17: #{tpu_custom_call.1} parent=1 // pred_fallthru
      _
    // Predicated region
    $region18: #{tpu_custom_call.1} parent=1 // pred_check
      _
    $region19: #{tpu_custom_call.1} parent=1 // pred_check_branch
      %45 = sbr.rel (0) target = $region21
    $region20: #{tpu_custom_call.1} parent=1 // pred_region
      %46 = dma.done [#allocation3], 1024
    $region21: #{tpu_custom_call.1} parent=1 // pred_fallthru
      _
    // Predicated region
    $region22: #{tpu_custom_call.1} parent=1 // pred_check
      _
    $region23: #{tpu_custom_call.1} parent=1 // pred_check_branch
      %48 = sbr.rel (0) target = $region25
    $region24: #{tpu_custom_call.1} parent=1 // pred_region
      %49 = dma.done [#allocation6], 1024
    $region25: #{tpu_custom_call.1} parent=1 // pred_fallthru
      _
    %v51 = vld [vmem:[#allocation2] sm:$0xf]
    %v52 = vld [vmem:[#allocation2 + $0x4] sm:$0xf]
    %v53 = vld [vmem:[#allocation2 + $0x8] sm:$0xf]
    %v54 = vld [vmem:[#allocation2 + $0xc] sm:$0xf]
    %v55 = vld [vmem:[#allocation2 + $0x10] sm:$0xf]
    %v56 = vld [vmem:[#allocation2 + $0x14] sm:$0xf]
    %v57 = vld [vmem:[#allocation2 + $0x18] sm:$0xf]
    %v58 = vld [vmem:[#allocation2 + $0x1c] sm:$0xf]
    %v59 = vld [vmem:[#allocation2 + $0x20] sm:$0xf]
    %v60 = vld [vmem:[#allocation2 + $0x24] sm:$0xf]
    %v61 = vld [vmem:[#allocation2 + $0x28] sm:$0xf]
    %v62 = vld [vmem:[#allocation2 + $0x2c] sm:$0xf]
    %v63 = vld [vmem:[#allocation2 + $0x30] sm:$0xf]
    %v64 = vld [vmem:[#allocation2 + $0x34] sm:$0xf]
    %v65 = vld [vmem:[#allocation2 + $0x38] sm:$0xf]
    %v66 = vld [vmem:[#allocation2 + $0x3c] sm:$0xf]
    %v67 = vld [vmem:[#allocation5] sm:$0xf]
    %v68 = vld [vmem:[#allocation5 + $0x4] sm:$0xf]
    %v69 = vld [vmem:[#allocation5 + $0x8] sm:$0xf]
    %v70 = vld [vmem:[#allocation5 + $0xc] sm:$0xf]
    %v71 = vld [vmem:[#allocation5 + $0x10] sm:$0xf]
    %v72 = vld [vmem:[#allocation5 + $0x14] sm:$0xf]
    %v73 = vld [vmem:[#allocation5 + $0x18] sm:$0xf]
    %v74 = vld [vmem:[#allocation5 + $0x1c] sm:$0xf]
    %v75 = vld [vmem:[#allocation5 + $0x20] sm:$0xf]
    %v76 = vld [vmem:[#allocation5 + $0x24] sm:$0xf]
    %v77 = vld [vmem:[#allocation5 + $0x28] sm:$0xf]
    %v78 = vld [vmem:[#allocation5 + $0x2c] sm:$0xf]
    %v79 = vld [vmem:[#allocation5 + $0x30] sm:$0xf]
    %v80 = vld [vmem:[#allocation5 + $0x34] sm:$0xf]
    %v81 = vld [vmem:[#allocation5 + $0x38] sm:$0xf]
    %v82 = vld [vmem:[#allocation5 + $0x3c] sm:$0xf]
    %v99 = vunpack.c.l.b16 %v51
    %v100 = vunpack.c.l.b16 %v52
    %v101 = vunpack.c.l.b16 %v53
    %v102 = vunpack.c.l.b16 %v54
    %v103 = vunpack.c.l.b16 %v55
    %v104 = vunpack.c.l.b16 %v56
    %v105 = vunpack.c.l.b16 %v57
    %v106 = vunpack.c.l.b16 %v58
    %v107 = vunpack.c.l.b16 %v59
    %v108 = vunpack.c.l.b16 %v60
    %v109 = vunpack.c.l.b16 %v61
    %v110 = vunpack.c.l.b16 %v62
    %v111 = vunpack.c.l.b16 %v63
    %v112 = vunpack.c.l.b16 %v64
    %v113 = vunpack.c.l.b16 %v65
    %v114 = vunpack.c.l.b16 %v66
    %v115 = vpack.c.b16 %v100, %v99
    %v116 = vpack.c.b16 %v102, %v101
    %v117 = vpack.c.b16 %v104, %v103
    %v118 = vpack.c.b16 %v106, %v105
    %v119 = vpack.c.b16 %v108, %v107
    %v120 = vpack.c.b16 %v110, %v109
    %v121 = vpack.c.b16 %v112, %v111
    %v122 = vpack.c.b16 %v114, %v113
    %v147 = vunpack.c.l.b16 %v67
    %v148 = vunpack.c.l.b16 %v68
    %v149 = vunpack.c.l.b16 %v69
    %v150 = vunpack.c.l.b16 %v70
    %v151 = vunpack.c.l.b16 %v71
    %v152 = vunpack.c.l.b16 %v72
    %v153 = vunpack.c.l.b16 %v73
    %v154 = vunpack.c.l.b16 %v74
    %v155 = vunpack.c.l.b16 %v75
    %v156 = vunpack.c.l.b16 %v76
    %v157 = vunpack.c.l.b16 %v77
    %v158 = vunpack.c.l.b16 %v78
    %v159 = vunpack.c.l.b16 %v79
    %v160 = vunpack.c.l.b16 %v80
    %v161 = vunpack.c.l.b16 %v81
    %v162 = vunpack.c.l.b16 %v82
    %v163 = vpack.c.b16 %v148, %v147
    %v164 = vpack.c.b16 %v150, %v149
    %v165 = vpack.c.b16 %v152, %v151
    %v166 = vpack.c.b16 %v154, %v153
    %v167 = vpack.c.b16 %v156, %v155
    %v168 = vpack.c.b16 %v158, %v157
    %v169 = vpack.c.b16 %v160, %v159
    %v170 = vpack.c.b16 %v162, %v161
    %179 = vmatprep.subr.bf16.mxu0 0
    %180 = vmatpush1.bf16.msra.mxu0 %v170
    %181 = vmatprep.subr.bf16.mxu0 0
    %182 = vmatpush1.bf16.msra.mxu0 %v169
    %183 = vmatprep.subr.bf16.mxu0 0
    %184 = vmatpush1.bf16.msra.mxu0 %v168
    %185 = vmatprep.subr.bf16.mxu0 0
    %186 = vmatpush1.bf16.msra.mxu0 %v167
    %187 = vmatprep.subr.bf16.mxu0 0
    %188 = vmatpush1.bf16.msra.mxu0 %v166
    %189 = vmatprep.subr.bf16.mxu0 0
    %190 = vmatpush1.bf16.msra.mxu0 %v165
    %191 = vmatprep.subr.bf16.mxu0 0
    %192 = vmatpush1.bf16.msra.mxu0 %v164
    %193 = vmatprep.subr.bf16.mxu0 0
    %194 = vmatpush1.bf16.msra.mxu0 %v163
    %195 = vmatprep.subr.bf16.mxu0 0
    %196 = vmatpush2.bf16.msra.mxu0 0
    %197 = vmatprep.subr.bf16.mxu0 0
    %198 = vmatpush2.bf16.msra.mxu0 0
    %199 = vmatprep.subr.bf16.mxu0 0
    %200 = vmatpush2.bf16.msra.mxu0 0
    %201 = vmatprep.subr.bf16.mxu0 0
    %202 = vmatpush2.bf16.msra.mxu0 0
    %203 = vmatprep.subr.bf16.mxu0 0
    %204 = vmatpush2.bf16.msra.mxu0 0
    %205 = vmatprep.subr.bf16.mxu0 0
    %206 = vmatpush2.bf16.msra.mxu0 0
    %207 = vmatprep.subr.bf16.mxu0 0
    %208 = vmatpush2.bf16.msra.mxu0 0
    %209 = vmatprep.subr.bf16.mxu0 0
    %210 = vmatpush2.bf16.msra.mxu0 0
    %211 = vmatprep.mubr.bf16.mxu0 0
    %212 = vmatmul.mubr.bf16.gmra.mxu0 %v115
    %v213 = vpop.f32.mrf.mxu0
    %v214 = vadd.f32 0.0, %v213
    %v215 = vpop.f32.mrf.mxu0
    %v216 = vpop.f32.mrf.mxu0
    %v217 = vadd.f32 0.0, %v216
    %v218 = vpop.f32.mrf.mxu0
    %219 = vmatprep.mubr.bf16.mxu0 0
    %220 = vmatmul.mubr.bf16.gmra.mxu0 %v116
    %v221 = vpop.f32.mrf.mxu0
    %v222 = vadd.f32 0.0, %v221
    %v223 = vpop.f32.mrf.mxu0
    %v224 = vpop.f32.mrf.mxu0
    %v225 = vadd.f32 0.0, %v224
    %v226 = vpop.f32.mrf.mxu0
    %227 = vmatprep.mubr.bf16.mxu0 0
    %228 = vmatmul.mubr.bf16.gmra.mxu0 %v117
    %v229 = vpop.f32.mrf.mxu0
    %v230 = vadd.f32 0.0, %v229
    %v231 = vpop.f32.mrf.mxu0
    %v232 = vpop.f32.mrf.mxu0
    %v233 = vadd.f32 0.0, %v232
    %v234 = vpop.f32.mrf.mxu0
    %235 = vmatprep.mubr.bf16.mxu0 0
    %236 = vmatmul.mubr.bf16.gmra.mxu0 %v118
    %v237 = vpop.f32.mrf.mxu0
    %v238 = vadd.f32 0.0, %v237
    %v239 = vpop.f32.mrf.mxu0
    %v240 = vpop.f32.mrf.mxu0
    %v241 = vadd.f32 0.0, %v240
    %v242 = vpop.f32.mrf.mxu0
    %243 = vmatprep.mubr.bf16.mxu0 0
    %244 = vmatmul.mubr.bf16.gmra.mxu0 %v119
    %v245 = vpop.f32.mrf.mxu0
    %v246 = vadd.f32 0.0, %v245
    %v247 = vpop.f32.mrf.mxu0
    %v248 = vpop.f32.mrf.mxu0
    %v249 = vadd.f32 0.0, %v248
    %v250 = vpop.f32.mrf.mxu0
    %251 = vmatprep.mubr.bf16.mxu0 0
    %252 = vmatmul.mubr.bf16.gmra.mxu0 %v120
    %v253 = vpop.f32.mrf.mxu0
    %v254 = vadd.f32 0.0, %v253
    %v255 = vpop.f32.mrf.mxu0
    %v256 = vpop.f32.mrf.mxu0
    %v257 = vadd.f32 0.0, %v256
    %v258 = vpop.f32.mrf.mxu0
    %259 = vmatprep.mubr.bf16.mxu0 0
    %260 = vmatmul.mubr.bf16.gmra.mxu0 %v121
    %v261 = vpop.f32.mrf.mxu0
    %v262 = vadd.f32 0.0, %v261
    %v263 = vpop.f32.mrf.mxu0
    %v264 = vpop.f32.mrf.mxu0
    %v265 = vadd.f32 0.0, %v264
    %v266 = vpop.f32.mrf.mxu0
    %267 = vmatprep.mubr.bf16.mxu0 0
    %268 = vmatmul.mubr.bf16.gmra.mxu0 %v122
    %v269 = vpop.f32.mrf.mxu0
    %v270 = vadd.f32 0.0, %v269
    %v271 = vpop.f32.mrf.mxu0
    %v272 = vpop.f32.mrf.mxu0
    %v273 = vadd.f32 0.0, %v272
    %v274 = vpop.f32.mrf.mxu0
    %275 = vdwg.mxu0
    %v276 = vpack.c.bf16 %v217, %v214
    %v277 = vpack.c.bf16 %v225, %v222
    %v278 = vpack.c.bf16 %v233, %v230
    %v279 = vpack.c.bf16 %v241, %v238
    %v280 = vpack.c.bf16 %v249, %v246
    %v281 = vpack.c.bf16 %v257, %v254
    %v282 = vpack.c.bf16 %v265, %v262
    %v283 = vpack.c.bf16 %v273, %v270
    %v292 = vunpack.c.l.b16 %v276
    %v293 = vunpack.c.h.b16 %v276
    %v294 = vunpack.c.l.b16 %v277
    %v295 = vunpack.c.h.b16 %v277
    %v296 = vunpack.c.l.b16 %v278
    %v297 = vunpack.c.h.b16 %v278
    %v298 = vunpack.c.l.b16 %v279
    %v299 = vunpack.c.h.b16 %v279
    %v300 = vunpack.c.l.b16 %v280
    %v301 = vunpack.c.h.b16 %v280
    %v302 = vunpack.c.l.b16 %v281
    %v303 = vunpack.c.h.b16 %v281
    %v304 = vunpack.c.l.b16 %v282
    %v305 = vunpack.c.h.b16 %v282
    %v306 = vunpack.c.l.b16 %v283
    %v307 = vunpack.c.h.b16 %v283
    %v308 = vpack.c.b16 %v292, %v292
    %v309 = vpack.c.b16 %v293, %v293
    %v310 = vpack.c.b16 %v294, %v294
    %v311 = vpack.c.b16 %v295, %v295
    %v312 = vpack.c.b16 %v296, %v296
    %v313 = vpack.c.b16 %v297, %v297
    %v314 = vpack.c.b16 %v298, %v298
    %v315 = vpack.c.b16 %v299, %v299
    %v316 = vpack.c.b16 %v300, %v300
    %v317 = vpack.c.b16 %v301, %v301
    %v318 = vpack.c.b16 %v302, %v302
    %v319 = vpack.c.b16 %v303, %v303
    %v320 = vpack.c.b16 %v304, %v304
    %v321 = vpack.c.b16 %v305, %v305
    %v322 = vpack.c.b16 %v306, %v306
    %v323 = vpack.c.b16 %v307, %v307
    %340 = vst [vmem:[#allocation7] sm:$0xf] %v308
    %341 = vst [vmem:[#allocation7 + $0x4] sm:$0xf] %v309
    %342 = vst [vmem:[#allocation7 + $0x8] sm:$0xf] %v310
    %343 = vst [vmem:[#allocation7 + $0xc] sm:$0xf] %v311
    %344 = vst [vmem:[#allocation7 + $0x10] sm:$0xf] %v312
    %345 = vst [vmem:[#allocation7 + $0x14] sm:$0xf] %v313
    %346 = vst [vmem:[#allocation7 + $0x18] sm:$0xf] %v314
    %347 = vst [vmem:[#allocation7 + $0x1c] sm:$0xf] %v315
    %348 = vst [vmem:[#allocation7 + $0x20] sm:$0xf] %v316
    %349 = vst [vmem:[#allocation7 + $0x24] sm:$0xf] %v317
    %350 = vst [vmem:[#allocation7 + $0x28] sm:$0xf] %v318
    %351 = vst [vmem:[#allocation7 + $0x2c] sm:$0xf] %v319
    %352 = vst [vmem:[#allocation7 + $0x30] sm:$0xf] %v320
    %353 = vst [vmem:[#allocation7 + $0x34] sm:$0xf] %v321
    %354 = vst [vmem:[#allocation7 + $0x38] sm:$0xf] %v322
    %355 = vst [vmem:[#allocation7 + $0x3c] sm:$0xf] %v323
    %v356 = vld [vmem:[%s2] sm:$0x1]
    %v358 = vlaneseq
    %v359 = vshrl.u32 %v358, 7
    %v360 = vsub.s32 0, %v359
    %v361 = vrot.slane %v356, %v360
    %v363 = vmul.f32 %v214, %v361
    %v364 = vmul.f32 %v217, %v361
    %v365 = vmul.f32 %v222, %v361
    %v366 = vmul.f32 %v225, %v361
    %v367 = vmul.f32 %v230, %v361
    %v368 = vmul.f32 %v233, %v361
    %v369 = vmul.f32 %v238, %v361
    %v370 = vmul.f32 %v241, %v361
    %v371 = vmul.f32 %v246, %v361
    %v372 = vmul.f32 %v249, %v361
    %v373 = vmul.f32 %v254, %v361
    %v374 = vmul.f32 %v257, %v361
    %v375 = vmul.f32 %v262, %v361
    %v376 = vmul.f32 %v265, %v361
    %v377 = vmul.f32 %v270, %v361
    %v378 = vmul.f32 %v273, %v361
    %379 = vadd.xlane.f32.xlu0 %v363
    %v380 = vpop.xlane.xlu0 %379
    %381 = vadd.xlane.f32.xlu0 %v364
    %v382 = vpop.xlane.xlu0 %381
    %383 = vadd.xlane.f32.xlu0 %v365
    %v384 = vpop.xlane.xlu0 %383
    %385 = vadd.xlane.f32.xlu0 %v366
    %v386 = vpop.xlane.xlu0 %385
    %387 = vadd.xlane.f32.xlu0 %v367
    %v388 = vpop.xlane.xlu0 %387
    %389 = vadd.xlane.f32.xlu0 %v368
    %v390 = vpop.xlane.xlu0 %389
    %391 = vadd.xlane.f32.xlu0 %v369
    %v392 = vpop.xlane.xlu0 %391
    %393 = vadd.xlane.f32.xlu0 %v370
    %v394 = vpop.xlane.xlu0 %393
    %395 = vadd.xlane.f32.xlu0 %v371
    %v396 = vpop.xlane.xlu0 %395
    %397 = vadd.xlane.f32.xlu0 %v372
    %v398 = vpop.xlane.xlu0 %397
    %399 = vadd.xlane.f32.xlu0 %v373
    %v400 = vpop.xlane.xlu0 %399
    %401 = vadd.xlane.f32.xlu0 %v374
    %v402 = vpop.xlane.xlu0 %401
    %403 = vadd.xlane.f32.xlu0 %v375
    %v404 = vpop.xlane.xlu0 %403
    %405 = vadd.xlane.f32.xlu0 %v376
    %v406 = vpop.xlane.xlu0 %405
    %407 = vadd.xlane.f32.xlu0 %v377
    %v408 = vpop.xlane.xlu0 %407
    %409 = vadd.xlane.f32.xlu0 %v378
    %v410 = vpop.xlane.xlu0 %409
    %vm411 = vcmask 7168
    %412 = vst.msk [vmem:[%s5] sm:$0xff] %vm411, %v380
    %413 = vst.msk [vmem:[%s5 + $0x8] sm:$0xff] %vm411, %v382
    %414 = vst.msk [vmem:[%s5 + $0x10] sm:$0xff] %vm411, %v384
    %415 = vst.msk [vmem:[%s5 + $0x18] sm:$0xff] %vm411, %v386
    %416 = vst.msk [vmem:[%s5 + $0x20] sm:$0xff] %vm411, %v388
    %417 = vst.msk [vmem:[%s5 + $0x28] sm:$0xff] %vm411, %v390
    %418 = vst.msk [vmem:[%s5 + $0x30] sm:$0xff] %vm411, %v392
    %419 = vst.msk [vmem:[%s5 + $0x38] sm:$0xff] %vm411, %v394
    %420 = vst.msk [vmem:[%s5 + $0x40] sm:$0xff] %vm411, %v396
    %421 = vst.msk [vmem:[%s5 + $0x48] sm:$0xff] %vm411, %v398
    %422 = vst.msk [vmem:[%s5 + $0x50] sm:$0xff] %vm411, %v400
    %423 = vst.msk [vmem:[%s5 + $0x58] sm:$0xff] %vm411, %v402
    %424 = vst.msk [vmem:[%s5 + $0x60] sm:$0xff] %vm411, %v404
    %425 = vst.msk [vmem:[%s5 + $0x68] sm:$0xff] %vm411, %v406
    %426 = vst.msk [vmem:[%s5 + $0x70] sm:$0xff] %vm411, %v408
    %427 = vst.msk [vmem:[%s5 + $0x78] sm:$0xff] %vm411, %v410
    %v428 = vld [vmem:[%s3] sm:$0x1]
    %429 = vmatprep.subr.mxu0 0.0
    %430 = vmatpush1.xpose.msra.mxu0 %v273
    %431 = vmatprep.subr.mxu0 0.0
    %432 = vmatpush1.xpose.msra.mxu0 %v270
    %433 = vmatprep.subr.mxu0 0.0
    %434 = vmatpush1.xpose.msra.mxu0 %v265
    %435 = vmatprep.subr.mxu0 0.0
    %436 = vmatpush1.xpose.msra.mxu0 %v262
    %437 = vmatprep.subr.mxu0 0.0
    %438 = vmatpush1.xpose.msra.mxu0 %v257
    %439 = vmatprep.subr.mxu0 0.0
    %440 = vmatpush1.xpose.msra.mxu0 %v254
    %441 = vmatprep.subr.mxu0 0.0
    %442 = vmatpush1.xpose.msra.mxu0 %v249
    %443 = vmatprep.subr.mxu0 0.0
    %444 = vmatpush1.xpose.msra.mxu0 %v246
    %445 = vmatprep.subr.mxu0 0.0
    %446 = vmatpush1.xpose.msra.mxu0 %v241
    %447 = vmatprep.subr.mxu0 0.0
    %448 = vmatpush1.xpose.msra.mxu0 %v238
    %449 = vmatprep.subr.mxu0 0.0
    %450 = vmatpush1.xpose.msra.mxu0 %v233
    %451 = vmatprep.subr.mxu0 0.0
    %452 = vmatpush1.xpose.msra.mxu0 %v230
    %453 = vmatprep.subr.mxu0 0.0
    %454 = vmatpush1.xpose.msra.mxu0 %v225
    %455 = vmatprep.subr.mxu0 0.0
    %456 = vmatpush1.xpose.msra.mxu0 %v222
    %457 = vmatprep.subr.mxu0 0.0
    %458 = vmatpush1.xpose.msra.mxu0 %v217
    %459 = vmatprep.subr.mxu0 0.0
    %460 = vmatpush1.xpose.msra.mxu0 %v214
    %461 = vmatprep.subr.mxu0 0.0
    %462 = vmatpush2.xpose.msra.mxu0 0.0
    %463 = vmatprep.subr.mxu0 0.0
    %464 = vmatpush2.xpose.msra.mxu0 0.0
    %465 = vmatprep.subr.mxu0 0.0
    %466 = vmatpush2.xpose.msra.mxu0 0.0
    %467 = vmatprep.subr.mxu0 0.0
    %468 = vmatpush2.xpose.msra.mxu0 0.0
    %469 = vmatprep.subr.mxu0 0.0
    %470 = vmatpush2.xpose.msra.mxu0 0.0
    %471 = vmatprep.subr.mxu0 0.0
    %472 = vmatpush2.xpose.msra.mxu0 0.0
    %473 = vmatprep.subr.mxu0 0.0
    %474 = vmatpush2.xpose.msra.mxu0 0.0
    %475 = vmatprep.subr.mxu0 0.0
    %476 = vmatpush2.xpose.msra.mxu0 0.0
    %477 = vmatprep.subr.mxu0 0.0
    %478 = vmatpush2.xpose.msra.mxu0 0.0
    %479 = vmatprep.subr.mxu0 0.0
    %480 = vmatpush2.xpose.msra.mxu0 0.0
    %481 = vmatprep.subr.mxu0 0.0
    %482 = vmatpush2.xpose.msra.mxu0 0.0
    %483 = vmatprep.subr.mxu0 0.0
    %484 = vmatpush2.xpose.msra.mxu0 0.0
    %485 = vmatprep.subr.mxu0 0.0
    %486 = vmatpush2.xpose.msra.mxu0 0.0
    %487 = vmatprep.subr.mxu0 0.0
    %488 = vmatpush2.xpose.msra.mxu0 0.0
    %489 = vmatprep.subr.mxu0 0.0
    %490 = vmatpush2.xpose.msra.mxu0 0.0
    %491 = vmatprep.subr.mxu0 0.0
    %492 = vmatpush2.xpose.msra.mxu0 0.0
    %493 = vmatprep.mubr.f32.mxu0 0.0
    %494 = vmatmul.mubr.f32.gmra.mxu0 %v428
    %v495 = vpop.f32.mrf.mxu0
    %v496 = vadd.f32 0.0, %v495
    %v497 = vpop.f32.mrf.mxu0
    %498 = vdwg.mxu0
    %499 = vst [vmem:[#allocation8] sm:$0x1] %v496
    // Predicated region
    $region26: #{tpu_custom_call.1} parent=1 // pred_check
      _
    $region27: #{tpu_custom_call.1} parent=1 // pred_check_branch
      %501 = sbr.rel (0) target = $region29
    $region28: #{tpu_custom_call.1} parent=1 // pred_region
      %s503 = ssub.s32 1024, 1024
      %504 = vsyncadd [#allocation4], %s503
      %s505 = sshll.u32 [#allocation7], 4
      %s506 = int_to_ptr.vmem [resolvable:$true] %s505
      %511 = dma.vmem_to_hbm [thread:$0]  %s506, 1024, %s4, [#allocation4], 64, 64, 4
    $region29: #{tpu_custom_call.1} parent=1 // pred_fallthru
      _
    // Predicated region
    $region30: #{tpu_custom_call.1} parent=1 // pred_check
      _
    $region31: #{tpu_custom_call.1} parent=1 // pred_check_branch
      %513 = sbr.rel (0) target = $region33
    $region32: #{tpu_custom_call.1} parent=1 // pred_region
      _
    $region33: #{tpu_custom_call.1} parent=1 // pred_fallthru
      _
    // Predicated region
    $region34: #{tpu_custom_call.1} parent=1 // pred_check
      _
    $region35: #{tpu_custom_call.1} parent=1 // pred_check_branch
      %515 = sbr.rel (0) target = $region37
    $region36: #{tpu_custom_call.1} parent=1 // pred_region
      %s517 = ssub.s32 16, 16
      %518 = vsyncadd [#allocation9], %s517
      %s520 = sshll.u32 [#allocation8], 4
      %s521 = int_to_ptr.vmem [resolvable:$true] %s520
      %523 = dma.vmem_to_hbm [thread:$0]  %s521, 16, %s6, [#allocation9]
    $region37: #{tpu_custom_call.1} parent=1 // pred_fallthru
      _
    // Predicated region
    $region38: #{tpu_custom_call.1} parent=1 // pred_check
      _
    $region39: #{tpu_custom_call.1} parent=1 // pred_check_branch
      %525 = sbr.rel (0) target = $region41
    $region40: #{tpu_custom_call.1} parent=1 // pred_region
      %526 = dma.done [#allocation4], 1024
    $region41: #{tpu_custom_call.1} parent=1 // pred_fallthru
      _
    // Predicated region
    $region42: #{tpu_custom_call.1} parent=1 // pred_check
      _
    $region43: #{tpu_custom_call.1} parent=1 // pred_check_branch
      %528 = sbr.rel (0) target = $region45
    $region44: #{tpu_custom_call.1} parent=1 // pred_region
      _
    $region45: #{tpu_custom_call.1} parent=1 // pred_fallthru
      _
    // Predicated region
    $region46: #{tpu_custom_call.1} parent=1 // pred_check
      _
    $region47: #{tpu_custom_call.1} parent=1 // pred_check_branch
      %530 = sbr.rel (0) target = $region49
    $region48: #{tpu_custom_call.1} parent=1 // pred_region
      %531 = dma.done [#allocation9], 16
    $region49: #{tpu_custom_call.1} parent=1 // pred_fallthru
      _
    %532 = vsyncpa [#allocation3], 1
    %533 = vsyncpa [#allocation6], 1
    %534 = vsyncpa [#allocation4], 1
    %535 = vsyncpa [#allocation9], 1

</llo_original>
